<compile_context>
chip_gen: v6e
topology: v6e:2x2x1
jax: 0.10.0
libtpu: 0.0.40
codegen_flags: <defaults>
</compile_context>

<pallas_src>
import functools

import jax
import jax.numpy as jnp
from jax import lax
from jax.experimental import pallas as pl
from jax.experimental.pallas import tpu as pltpu


def _round_up(x: int, m: int) -> int:
    return ((x + m - 1) // m) * m


def _next_pow2(x: int) -> int:
    return 1 << max(0, (int(x) - 1).bit_length())


# v7x has 64 MiB VMEM per TensorCore (vs 128 MiB on v5e/v6e); budget tiles
# against the smaller generation so the same kernel fits everywhere.
_VMEM_TILE_BUDGET = 40 * 1024 * 1024
_VMEM_LIMIT_CAP = 48 * 1024 * 1024


def _vmem_estimate(tile_n: int, d: int, k: int) -> int:
    io_per_step = 4 * (2 * tile_n * d + tile_n * k + tile_n + d)  # z, zq, prob, idx, sse
    fixed = 4 * (k * d + k)                                       # codebook^T + c2
    tmps = 4 * 4 * tile_n * k                                     # cross / e / one_hot / iota
    return 2 * (io_per_step + fixed) + tmps                       # double-buffered I/O


def _pick_tile_n(n: int, d: int, k: int) -> int:
    """Largest power-of-two row tile fitting the v7x-safe VMEM budget."""
    cap = max(8, _next_pow2(_round_up(n, 8)))
    for cand in (1024, 512, 256, 128, 64, 32, 16, 8):
        if cand > cap:
            continue
        if _vmem_estimate(cand, d, k) <= _VMEM_TILE_BUDGET:
            return cand
    return 8


def _codebook_kernel(z_ref, c2_ref, cbt_ref, zq_ref, prob_ref, idx_ref, sse_ref,
                     *, inv_jsd_ts, n_valid):
    """Per-tile VQ: distance logits on the MXU, softmax, argmin, one-hot gather.

    z_ref   : (TN, D)  tile of flattened latents
    c2_ref  : (1, K)   precomputed ||codebook||^2 (hoisted, constant block)
    cbt_ref : (D, K)   codebook pre-transposed (constant block)
    zq_ref  : (TN, D)  quantized latents (hard gather of nearest codeword)
    prob_ref: (TN, K)  softmax(-dist / jsd_ts)
    idx_ref : (1, TN)  argmin indices, lane-dense int32
    sse_ref : (1, D)   per-tile partial sums of (z_q - z)^2
    """
    z = z_ref[...].astype(jnp.float32)         # (TN, D)
    cbt = cbt_ref[...].astype(jnp.float32)     # (D, K)
    c2 = c2_ref[...].astype(jnp.float32)       # (1, K)

    # Squared distance = ||z||^2 + ||c||^2 - 2 z.c ; the per-row ||z||^2 term is
    # constant along K so it changes neither the softmax nor the argmin -> drop.
    cross = lax.dot_general(z, cbt, (((1,), (0,)), ((), ())),
                            preferred_element_type=jnp.float32)        # (TN, K)
    logits = (2.0 * cross - c2) * inv_jsd_ts

    # distance_prob = softmax(logits) along K; approx reciprocal uses the EUP
    # slot, one Newton-Raphson step brings it back to ~f32-exact.
    m = jnp.max(logits, axis=1, keepdims=True)                         # (TN, 1)
    e = jnp.exp(logits - m)
    s = jnp.sum(e, axis=1, keepdims=True)
    inv_sum = pl.reciprocal(s, approx=True)
    inv_sum = inv_sum * (2.0 - s * inv_sum)
    prob_ref[...] = (e * inv_sum).astype(prob_ref.dtype)

    # argmin(dist) == argmax(logits): reuse the softmax max `m`, first index on
    # ties (matches torch.argmin).  Kept in f32 (indices < 2^24 are exact).
    k = logits.shape[1]
    col = lax.broadcasted_iota(jnp.int32, logits.shape, 1).astype(jnp.float32)
    idx_col = jnp.min(jnp.where(logits == m, col, float(k)),
                      axis=1, keepdims=True)                           # (TN, 1)

    # Hard gather z_q = codebook[idx] via an exact 0/1 one-hot matmul (MXU).
    one_hot = (col == idx_col).astype(jnp.float32)                     # (TN, K)
    zq = lax.dot_general(one_hot, cbt, (((1,), (1,)), ((), ())),
                         preferred_element_type=jnp.float32)           # (TN, D)
    zq_ref[...] = zq.astype(zq_ref.dtype)

    # Lane-dense index row: contract the one-hot with [0..K-1] over K on the
    # MXU, giving a (1, TN) row that is stored with full-width (unmasked) vst.
    col_row = lax.broadcasted_iota(jnp.int32, (1, k), 1).astype(jnp.float32)
    idx_row = lax.dot_general(col_row, one_hot, (((1,), (1,)), ((), ())),
                              preferred_element_type=jnp.float32)      # (1, TN)
    idx_ref[...] = idx_row.astype(jnp.int32)

    # Per-tile partial SSE for the VQ loss (mask padded rows if any).
    diff = zq - z
    if n_valid is not None:
        tile_n = z.shape[0]
        row = (pl.program_id(0) * tile_n
               + lax.broadcasted_iota(jnp.int32, (tile_n, 1), 0))
        diff = jnp.where(row < n_valid, diff, 0.0)
    sse_ref[...] = jnp.sum(diff * diff, axis=0, keepdims=True)         # (1, D)


def _vq_flat(z_flat, codebook_t, c2, *, jsd_ts, tile_n=None):
    """Run the VQ kernel over flattened latents.

    z_flat:     (N, D) f32
    codebook_t: (D, K) f32 (transposed codebook)
    c2:         (1, K) f32 (codebook squared norms)
    returns: z_q (N, D), distance_prob (N, K), indices (N,) int32, sse (scalar)
    """
    n, d = z_flat.shape
    k = codebook_t.shape[1]
    if tile_n is None:
        tile_n = _pick_tile_n(n, d, k)

    n_pad = _round_up(n, tile_n)
    # Prefer >= 2 grid steps so dimension_semantics=("parallel",) can split the
    # row loop across both TensorCores on v7x-class chips.
    while n_pad // tile_n < 2 and tile_n >= 256:
        tile_n //= 2
        n_pad = _round_up(n, tile_n)
    num_tiles = n_pad // tile_n
    if n_pad != n:
        z_flat = jnp.pad(z_flat, ((0, n_pad - n), (0, 0)))

    kernel = functools.partial(
        _codebook_kernel,
        inv_jsd_ts=float(1.0 / jsd_ts),
        n_valid=(n if n_pad != n else None))

    vmem_limit = int(min(max(_vmem_estimate(tile_n, d, k) * 3 // 2,
                             32 * 1024 * 1024), _VMEM_LIMIT_CAP))

    zq, prob, idx, sse = pl.pallas_call(
        kernel,
        out_shape=(
            jax.ShapeDtypeStruct((n_pad, d), jnp.float32),          # z_q
            jax.ShapeDtypeStruct((n_pad, k), jnp.float32),          # distance_prob
            jax.ShapeDtypeStruct((num_tiles, tile_n), jnp.int32),   # indices (lane-dense)
            jax.ShapeDtypeStruct((num_tiles, d), jnp.float32),      # per-tile SSE partials
        ),
        grid_spec=pltpu.PrefetchScalarGridSpec(
            num_scalar_prefetch=0,
            grid=(num_tiles,),
            in_specs=[
                pl.BlockSpec((tile_n, d), lambda i: (i, 0)),        # z rows
                pl.BlockSpec((1, k), lambda i: (0, 0)),             # ||c||^2 (constant)
                pl.BlockSpec((d, k), lambda i: (0, 0)),             # codebook^T (constant)
            ],
            out_specs=[
                pl.BlockSpec((tile_n, d), lambda i: (i, 0)),
                pl.BlockSpec((tile_n, k), lambda i: (i, 0)),
                pl.BlockSpec((1, tile_n), lambda i: (i, 0)),
                pl.BlockSpec((1, d), lambda i: (i, 0)),
            ],
        ),
        compiler_params=pltpu.CompilerParams(
            dimension_semantics=("parallel",),
            vmem_limit_bytes=vmem_limit),
    )(z_flat, c2, codebook_t)

    zq = zq[:n]
    prob = prob[:n]
    indices = idx.reshape(-1)[:n]
    sse_total = jnp.sum(sse)
    return zq, prob, indices, sse_total


def codebook_forward(z, z_pos, embedding_weight, *, beta=0.25, book=1.0,
                     jsd_ts=1.0, tile_n=None):
    """JAX/Pallas equivalent of Codebook.forward (eval mode, defaults).

    z, z_pos:          (b, d, h, w) NCHW, as in the PyTorch module
    embedding_weight:  (K, d)
    returns: (z_q [b,d,h,w], output dict, distance_prob [b,h,w,K],
              min_encoding_indices [b,h,w])
    """
    b, d, h, w = z.shape
    k = embedding_weight.shape[0]
    n = b * h * w

    # NCHW -> NHWC -> (N, D)
    z_flat = jnp.transpose(z, (0, 2, 3, 1)).reshape(n, d)

    # normalize == 'none': z_norm = z_flat, codebook_norm = codebook.
    # TODO(synk): 'l2' / 'z_norm' / 'z_trainable' normalization, gumbel /
    # weighted-sum paths, pq_dropout and training-time restart/split/kmeans
    # init are stateful or config-off by default and are not implemented here.
    codebook = embedding_weight.astype(jnp.float32)
    codebook_t = codebook.T                                     # (D, K)
    c2 = jnp.sum(codebook * codebook, axis=1)[None, :]          # (1, K), hoisted

    # TODO(synk): the reference also computes pos_distance_prob from z_pos, but
    # it is neither returned nor stored, so that dead computation is dropped.
    del z_pos

    z_q_flat, distance_prob, min_idx, sse = _vq_flat(
        z_flat, codebook_t, c2, jsd_ts=jsd_ts, tile_n=tile_n)

    # codebook_loss == commitment_loss == mean((z_q - z)^2) in the forward pass
    # (detach() has no numerical effect on the value); the SSE comes fused from
    # the kernel so z / z_q are not re-streamed from HBM for the loss.
    mse = sse / float(n * d)
    q_loss = book * mse + beta * mse

    # Straight-through estimator leaves z_q numerically unchanged in forward.
    z_q = z_q_flat.reshape(b, h, w, d).transpose(0, 3, 1, 2)    # back to NCHW
    min_encoding_indices = min_idx.reshape(b, h, w)
    distance_prob = distance_prob.reshape(b, h, w, k)

    output = {"vq-loss": q_loss}
    return z_q, output, distance_prob, min_encoding_indices


if __name__ == "__main__":
    # Small, module-consistent shapes.
    b, latent_dim, h, w = 2, 32, 8, 8
    num_codebook_vectors = 128

    key = jax.random.PRNGKey(0)
    k_z, k_zp, k_emb = jax.random.split(key, 3)

    z = jax.random.normal(k_z, (b, latent_dim, h, w), dtype=jnp.float32)
    z_pos = jax.random.normal(k_zp, (b, latent_dim, h, w), dtype=jnp.float32)

    # nn.Embedding init: uniform(-1/K, 1/K)
    embedding_weight = jax.random.uniform(
        k_emb, (num_codebook_vectors, latent_dim),
        minval=-1.0 / num_codebook_vectors,
        maxval=1.0 / num_codebook_vectors, dtype=jnp.float32)

    fwd = jax.jit(functools.partial(codebook_forward, beta=0.25, book=1.0,
                                    jsd_ts=1.0))
    z_q, output, distance_prob, min_idx = fwd(z, z_pos, embedding_weight)
    jax.block_until_ready((z_q, output["vq-loss"], distance_prob, min_idx))

    # --- Sanity checks against a pure-JAX reference --------------------------
    z_flat = jnp.transpose(z, (0, 2, 3, 1)).reshape(-1, latent_dim)
    logits_ref = (2.0 * z_flat @ embedding_weight.T
                  - jnp.sum(embedding_weight ** 2, axis=1)[None, :])
    prob_ref = jax.nn.softmax(logits_ref, axis=1).reshape(b, h, w, -1)
    # approx reciprocal + one NR step in the kernel -> near f32-exact probs.
    assert jnp.allclose(distance_prob, prob_ref, atol=1e-4), "prob mismatch"

    idx_flat = min_idx.reshape(-1)
    idx_ref = jnp.argmax(logits_ref, axis=1).astype(jnp.int32)
    match = float(jnp.mean((idx_flat == idx_ref).astype(jnp.float32)))
    assert match >= 0.99, f"index mismatch rate {1.0 - match}"

    zq_ref = embedding_weight[idx_flat].reshape(b, h, w, latent_dim)
    zq_ref = jnp.transpose(zq_ref, (0, 3, 1, 2))
    assert jnp.allclose(z_q, zq_ref, atol=1e-6), "z_q mismatch"

    mse_ref = jnp.mean((zq_ref - z) ** 2)
    assert jnp.allclose(output["vq-loss"], 1.25 * mse_ref,
                        rtol=1e-4, atol=1e-7), "loss mismatch"

    assert z_q.shape == (b, latent_dim, h, w)
    assert min_idx.shape == (b, h, w)
    assert distance_prob.shape == (b, h, w, num_codebook_vectors)

    print("KERNEL_OK")
</pallas_src>

<mosaic_0001>
module attributes {stable_mosaic.version = 11 : i64} {
  func.func @_codebook_kernel(%arg0: i32, %arg1: memref<128x32xf32, #tpu.memory_space<vmem>>, %arg2: memref<1x128xf32, #tpu.memory_space<vmem>>, %arg3: memref<32x128xf32, #tpu.memory_space<vmem>>, %arg4: memref<128x32xf32, #tpu.memory_space<vmem>>, %arg5: memref<128x128xf32, #tpu.memory_space<vmem>>, %arg6: memref<1x128xi32, #tpu.memory_space<vmem>>, %arg7: memref<1x32xf32, #tpu.memory_space<vmem>>) attributes {dimension_semantics = [#tpu.dimension_semantics<parallel>], iteration_bounds = array<i64: 1>, scalar_prefetch = 0 : i64, scratch_operands = 0 : i64, tpu.core_type = #tpu.core_type<tc>, window_params = [{transform_indices = @transform_0, window_bounds = array<i64: 128, 32>}, {pipeline_mode = #tpu.pipeline_mode<synchronous>, transform_indices = @transform_1, window_bounds = array<i64: 1, 128>}, {pipeline_mode = #tpu.pipeline_mode<synchronous>, transform_indices = @transform_2, window_bounds = array<i64: 32, 128>}, {transform_indices = @transform_3, window_bounds = array<i64: 128, 32>}, {transform_indices = @transform_4, window_bounds = array<i64: 128, 128>}, {transform_indices = @transform_5, window_bounds = array<i64: 1, 128>}, {transform_indices = @transform_6, window_bounds = array<i64: 1, 32>}]} {
    %c0 = arith.constant 0 : index
    %c0_0 = arith.constant 0 : index
    %0 = vector.load %arg1[%c0, %c0_0] : memref<128x32xf32, #tpu.memory_space<vmem>>, vector<128x32xf32>
    %c0_1 = arith.constant 0 : index
    %c0_2 = arith.constant 0 : index
    %1 = vector.load %arg3[%c0_1, %c0_2] : memref<32x128xf32, #tpu.memory_space<vmem>>, vector<32x128xf32>
    %c0_3 = arith.constant 0 : index
    %c0_4 = arith.constant 0 : index
    %2 = vector.load %arg2[%c0_3, %c0_4] : memref<1x128xf32, #tpu.memory_space<vmem>>, vector<1x128xf32>
    %cst = arith.constant dense<0.000000e+00> : vector<128x128xf32>
    %3 = tpu.matmul %0, %1, %cst {dimension_numbers = #tpu.dot_dimension_numbers<[1], [0], [0], [1], [0, 0, 1, 1], [], []>} : vector<128x32xf32>, vector<32x128xf32>, vector<128x128xf32> -> vector<128x128xf32>
    %cst_5 = arith.constant 2.000000e+00 : f32
    %4 = vector.broadcast %cst_5 : f32 to vector<128x128xf32>
    %5 = arith.mulf %4, %3 : vector<128x128xf32>
    %6 = vector.broadcast %2 : vector<1x128xf32> to vector<128x128xf32>
    %7 = arith.subf %5, %6 : vector<128x128xf32>
    %cst_6 = arith.constant 1.000000e+00 : f32
    %8 = vector.broadcast %cst_6 : f32 to vector<128x128xf32>
    %9 = arith.mulf %7, %8 : vector<128x128xf32>
    %cst_7 = arith.constant dense<0xFF800000> : vector<128xf32>
    %10 = vector.multi_reduction <maximumf>, %9, %cst_7 [1] : vector<128x128xf32> to vector<128xf32>
    %11 = vector.shape_cast %10 : vector<128xf32> to vector<128x1xf32>
    %12 = vector.broadcast %11 : vector<128x1xf32> to vector<128x128xf32>
    %13 = arith.subf %9, %12 : vector<128x128xf32>
    %14 = math.exp %13 : vector<128x128xf32>
    %cst_8 = arith.constant dense<0.000000e+00> : vector<128xf32>
    %15 = vector.multi_reduction <add>, %14, %cst_8 [1] : vector<128x128xf32> to vector<128xf32>
    %16 = vector.shape_cast %15 : vector<128xf32> to vector<128x1xf32>
    %17 = tpu.reciprocal %16 {approx = true} : vector<128x1xf32> -> vector<128x1xf32>
    %18 = arith.mulf %16, %17 : vector<128x1xf32>
    %cst_9 = arith.constant 2.000000e+00 : f32
    %19 = vector.broadcast %cst_9 : f32 to vector<128x1xf32>
    %20 = arith.subf %19, %18 : vector<128x1xf32>
    %21 = arith.mulf %17, %20 : vector<128x1xf32>
    %22 = vector.broadcast %21 : vector<128x1xf32> to vector<128x128xf32>
    %23 = arith.mulf %14, %22 : vector<128x128xf32>
    %c0_10 = arith.constant 0 : index
    %c0_11 = arith.constant 0 : index
    %24 = vector.load %arg5[%c0_10, %c0_11] : memref<128x128xf32, #tpu.memory_space<vmem>>, vector<128x128xf32>
    tpu.vector_store %arg5[%c0_10, %c0_11], %23 {strides = array<i32>} : memref<128x128xf32, #tpu.memory_space<vmem>>, vector<128x128xf32>,
    %25 = tpu.iota {dimensions = array<i32: 1>} : vector<128x128xi32>
    %26 = arith.sitofp %25 : vector<128x128xi32> to vector<128x128xf32>
    %27 = vector.broadcast %11 : vector<128x1xf32> to vector<128x128xf32>
    %28 = arith.cmpf oeq, %9, %27 : vector<128x128xf32>
    %cst_12 = arith.constant 1.280000e+02 : f32
    %29 = vector.broadcast %cst_12 : f32 to vector<128x128xf32>
    %30 = arith.select %28, %26, %29 : vector<128x128xi1>, vector<128x128xf32>
    %cst_13 = arith.constant dense<0x7F800000> : vector<128xf32>
    %31 = vector.multi_reduction <minimumf>, %30, %cst_13 [1] : vector<128x128xf32> to vector<128xf32>
    %32 = vector.shape_cast %31 : vector<128xf32> to vector<128x1xf32>
    %33 = vector.broadcast %32 : vector<128x1xf32> to vector<128x128xf32>
    %34 = arith.cmpf oeq, %26, %33 : vector<128x128xf32>
    %35 = arith.extui %34 : vector<128x128xi1> to vector<128x128xi32>
    %36 = arith.sitofp %35 : vector<128x128xi32> to vector<128x128xf32>
    %cst_14 = arith.constant dense<0.000000e+00> : vector<128x32xf32>
    %37 = tpu.matmul %36, %1, %cst_14 {dimension_numbers = #tpu.dot_dimension_numbers<[1], [1], [0], [0], [0, 0, 1, 0], [], []>} : vector<128x128xf32>, vector<32x128xf32>, vector<128x32xf32> -> vector<128x32xf32>
    %c0_15 = arith.constant 0 : index
    %c0_16 = arith.constant 0 : index
    %38 = vector.load %arg4[%c0_15, %c0_16] : memref<128x32xf32, #tpu.memory_space<vmem>>, vector<128x32xf32>
    tpu.vector_store %arg4[%c0_15, %c0_16], %37 {strides = array<i32>} : memref<128x32xf32, #tpu.memory_space<vmem>>, vector<128x32xf32>,
    %39 = tpu.iota {dimensions = array<i32: 1>} : vector<1x128xi32>
    %40 = arith.sitofp %39 : vector<1x128xi32> to vector<1x128xf32>
    %cst_17 = arith.constant dense<0.000000e+00> : vector<1x128xf32>
    %41 = tpu.matmul %40, %36, %cst_17 {dimension_numbers = #tpu.dot_dimension_numbers<[1], [1], [0], [0], [0, 0, 1, 0], [], []>} : vector<1x128xf32>, vector<128x128xf32>, vector<1x128xf32> -> vector<1x128xf32>
    %42 = arith.fptosi %41 : vector<1x128xf32> to vector<1x128xi32>
    %c0_18 = arith.constant 0 : index
    %c0_19 = arith.constant 0 : index
    %43 = vector.load %arg6[%c0_18, %c0_19] : memref<1x128xi32, #tpu.memory_space<vmem>>, vector<1x128xi32>
    tpu.vector_store %arg6[%c0_18, %c0_19], %42 {strides = array<i32>} : memref<1x128xi32, #tpu.memory_space<vmem>>, vector<1x128xi32>,
    %44 = arith.subf %37, %0 : vector<128x32xf32>
    %45 = arith.mulf %44, %44 : vector<128x32xf32>
    %cst_20 = arith.constant dense<0.000000e+00> : vector<32xf32>
    %46 = vector.multi_reduction <add>, %45, %cst_20 [0] : vector<128x32xf32> to vector<32xf32>
    %47 = vector.shape_cast %46 : vector<32xf32> to vector<1x32xf32>
    %c0_21 = arith.constant 0 : index
    %c0_22 = arith.constant 0 : index
    %48 = vector.load %arg7[%c0_21, %c0_22] : memref<1x32xf32, #tpu.memory_space<vmem>>, vector<1x32xf32>
    tpu.vector_store %arg7[%c0_21, %c0_22], %47 {strides = array<i32>} : memref<1x32xf32, #tpu.memory_space<vmem>>, vector<1x32xf32>,
    return
  }
  func.func @transform_0(%arg0: i32) -> (i32, i32) {
    %c0_i32 = arith.constant 0 : i32
    %c0_i32_0 = arith.constant 0 : i32
    return %arg0, %c0_i32 : i32, i32
  }
  func.func @transform_1(%arg0: i32) -> (i32, i32) {
    %c0_i32 = arith.constant 0 : i32
    %c0_i32_0 = arith.constant 0 : i32
    %c0_i32_1 = arith.constant 0 : i32
    return %c0_i32, %c0_i32_0 : i32, i32
  }
  func.func @transform_2(%arg0: i32) -> (i32, i32) {
    %c0_i32 = arith.constant 0 : i32
    %c0_i32_0 = arith.constant 0 : i32
    %c0_i32_1 = arith.constant 0 : i32
    return %c0_i32, %c0_i32_0 : i32, i32
  }
  func.func @transform_3(%arg0: i32) -> (i32, i32) {
    %c0_i32 = arith.constant 0 : i32
    %c0_i32_0 = arith.constant 0 : i32
    return %arg0, %c0_i32 : i32, i32
  }
  func.func @transform_4(%arg0: i32) -> (i32, i32) {
    %c0_i32 = arith.constant 0 : i32
    %c0_i32_0 = arith.constant 0 : i32
    return %arg0, %c0_i32 : i32, i32
  }
  func.func @transform_5(%arg0: i32) -> (i32, i32) {
    %c0_i32 = arith.constant 0 : i32
    %c0_i32_0 = arith.constant 0 : i32
    return %arg0, %c0_i32 : i32, i32
  }
  func.func @transform_6(%arg0: i32) -> (i32, i32) {
    %c0_i32 = arith.constant 0 : i32
    %c0_i32_0 = arith.constant 0 : i32
    return %arg0, %c0_i32 : i32, i32
  }
}

</mosaic_0001>

<llo_original>
// kernel: codebook_forward.1
$region0: #{codebook_forward.1}
  #allocation0 [shape = 'u32[]', space=smem, size = 0x4, offset = 0x4, fixed_abs, tag = 'smem constant byte address 0x4 - core index']
  #allocation1 [shape = 'u32[144,128]{1,0:T(1,128)}', space=vmem, size = 0x12000, scoped, tag = 'internal scratch']
  %s0 = inlined_call_operand.hbm [shape: f32[128,32], index: 0, kind: input, shape index: {}]
  %s1 = inlined_call_operand.vmem [shape: f32[1,128], index: 1, kind: input, shape index: {}]
  %s2 = inlined_call_operand.vmem [shape: f32[32,128], index: 2, kind: input, shape index: {}]
  %s3 = inlined_call_operand.hbm [shape: f32[128,32], index: 3, kind: output, shape index: {0}]
  %s4 = inlined_call_operand.hbm [shape: f32[128,128], index: 4, kind: output, shape index: {1}]
  %s5 = inlined_call_operand.vmem [shape: s32[1,128], index: 5, kind: output, shape index: {2}]
  %s6 = inlined_call_operand.vmem [shape: f32[1,32], index: 6, kind: output, shape index: {3}]
  %7 = xla_tuple %s3, %s4, %s5, %s6
  %s8 = sld [smem:[#allocation0]]
  $region50: #{codebook_forward.1} parent=0
    _
  %s10 = ssub.s32 1, %s8
  %s11 = scalar_select 0, %s10, %s8
  $region1: #{codebook_forward.1} parent=0
    #allocation2 [shape = 'u8[65536]{0}', space=vmem, size = 0x10000, scoped, tag = 'input window, operand 0, single buffered']
    #allocation3 [shape = 's32[1]{0}', space=sflag, size = 0x4, scoped, tag = 'scoped memory for codebook_forward.1']
    #allocation4 [shape = 's32[1]{0}', space=sflag, size = 0x4, scoped, tag = 'scoped memory for codebook_forward.1']
    #allocation5 [shape = 'u8[65536]{0}', space=vmem, size = 0x10000, scoped, tag = 'output window, operand 0, single buffered']
    #allocation6 [shape = 'u8[65536]{0}', space=vmem, size = 0x10000, scoped, tag = 'output window, operand 1, single buffered']
    #allocation7 [shape = 's32[1]{0}', space=sflag, size = 0x4, scoped, tag = 'scoped memory for codebook_forward.1']
    %12 = vsyncpa [#allocation3], 0
    %13 = vsyncpa [#allocation4], 0
    %14 = vsyncpa [#allocation7], 0
    // Predicated region
    $region2: #{codebook_forward.1} parent=1 // pred_check
      _
    $region3: #{codebook_forward.1} parent=1 // pred_check_branch
      %16 = sbr.rel (0) target = $region5
    $region4: #{codebook_forward.1} parent=1 // pred_region
      %s18 = ssub.s32 2048, 2048
      %19 = vsyncadd [#allocation3], %s18
      %s20 = sshll.u32 [#allocation2], 4
      %s21 = int_to_ptr.vmem [resolvable:$true] %s20
      %26 = dma.hbm_to_vmem [thread:$0]  %s0, 2048, %s21, [#allocation3], 128, 128, 8
    $region5: #{codebook_forward.1} parent=1 // pred_fallthru
      _
    // Predicated region
    $region6: #{codebook_forward.1} parent=1 // pred_check
      _
    $region7: #{codebook_forward.1} parent=1 // pred_check_branch
      %28 = sbr.rel (0) target = $region9
    $region8: #{codebook_forward.1} parent=1 // pred_region
      _
    $region9: #{codebook_forward.1} parent=1 // pred_fallthru
      _
    // Predicated region
    $region10: #{codebook_forward.1} parent=1 // pred_check
      _
    $region11: #{codebook_forward.1} parent=1 // pred_check_branch
      %30 = sbr.rel (0) target = $region13
    $region12: #{codebook_forward.1} parent=1 // pred_region
      _
    $region13: #{codebook_forward.1} parent=1 // pred_fallthru
      _
    // Predicated region
    $region14: #{codebook_forward.1} parent=1 // pred_check
      _
    $region15: #{codebook_forward.1} parent=1 // pred_check_branch
      %32 = sbr.rel (0) target = $region17
    $region16: #{codebook_forward.1} parent=1 // pred_region
      %33 = dma.done [#allocation3], 2048
    $region17: #{codebook_forward.1} parent=1 // pred_fallthru
      _
    %v34 = vld [vmem:[#allocation2] sm:$0xff]
    %v35 = vld [vmem:[#allocation2 + $0x8] sm:$0xff]
    %v36 = vld [vmem:[#allocation2 + $0x10] sm:$0xff]
    %v37 = vld [vmem:[#allocation2 + $0x18] sm:$0xff]
    %v38 = vld [vmem:[#allocation2 + $0x20] sm:$0xff]
    %v39 = vld [vmem:[#allocation2 + $0x28] sm:$0xff]
    %v40 = vld [vmem:[#allocation2 + $0x30] sm:$0xff]
    %v41 = vld [vmem:[#allocation2 + $0x38] sm:$0xff]
    %v42 = vld [vmem:[#allocation2 + $0x40] sm:$0xff]
    %v43 = vld [vmem:[#allocation2 + $0x48] sm:$0xff]
    %v44 = vld [vmem:[#allocation2 + $0x50] sm:$0xff]
    %v45 = vld [vmem:[#allocation2 + $0x58] sm:$0xff]
    %v46 = vld [vmem:[#allocation2 + $0x60] sm:$0xff]
    %v47 = vld [vmem:[#allocation2 + $0x68] sm:$0xff]
    %v48 = vld [vmem:[#allocation2 + $0x70] sm:$0xff]
    %v49 = vld [vmem:[#allocation2 + $0x78] sm:$0xff]
    %v50 = vld [vmem:[%s2] sm:$0xff]
    %v51 = vld [vmem:[%s2 + $0x8] sm:$0xff]
    %v52 = vld [vmem:[%s2 + $0x10] sm:$0xff]
    %v53 = vld [vmem:[%s2 + $0x18] sm:$0xff]
    %v54 = vld [vmem:[%s1] sm:$0x1]
    %vm55 = vcmask 261120
    %v57 = vsel %vm55, %v34, 0
    %v60 = vsel %vm55, %v35, 0
    %v63 = vsel %vm55, %v36, 0
    %v66 = vsel %vm55, %v37, 0
    %v69 = vsel %vm55, %v38, 0
    %v72 = vsel %vm55, %v39, 0
    %v75 = vsel %vm55, %v40, 0
    %v78 = vsel %vm55, %v41, 0
    %v81 = vsel %vm55, %v42, 0
    %v84 = vsel %vm55, %v43, 0
    %v87 = vsel %vm55, %v44, 0
    %v90 = vsel %vm55, %v45, 0
    %v93 = vsel %vm55, %v46, 0
    %v96 = vsel %vm55, %v47, 0
    %v99 = vsel %vm55, %v48, 0
    %v102 = vsel %vm55, %v49, 0
    %104 = vmatprep.subr.mxu0 0.0
    %105 = vmatpush1.msra.mxu0 0.0
    %106 = vmatprep.subr.mxu0 0.0
    %107 = vmatpush1.msra.mxu0 0.0
    %108 = vmatprep.subr.mxu0 0.0
    %109 = vmatpush1.msra.mxu0 0.0
    %110 = vmatprep.subr.mxu0 0.0
    %111 = vmatpush1.msra.mxu0 0.0
    %112 = vmatprep.subr.mxu0 0.0
    %113 = vmatpush1.msra.mxu0 0.0
    %114 = vmatprep.subr.mxu0 0.0
    %115 = vmatpush1.msra.mxu0 0.0
    %116 = vmatprep.subr.mxu0 0.0
    %117 = vmatpush1.msra.mxu0 0.0
    %118 = vmatprep.subr.mxu0 0.0
    %119 = vmatpush1.msra.mxu0 0.0
    %120 = vmatprep.subr.mxu0 0.0
    %121 = vmatpush1.msra.mxu0 0.0
    %122 = vmatprep.subr.mxu0 0.0
    %123 = vmatpush1.msra.mxu0 0.0
    %124 = vmatprep.subr.mxu0 0.0
    %125 = vmatpush1.msra.mxu0 0.0
    %126 = vmatprep.subr.mxu0 0.0
    %127 = vmatpush1.msra.mxu0 0.0
    %128 = vmatprep.subr.mxu0 0.0
    %129 = vmatpush1.msra.mxu0 %v53
    %130 = vmatprep.subr.mxu0 0.0
    %131 = vmatpush1.msra.mxu0 %v52
    %132 = vmatprep.subr.mxu0 0.0
    %133 = vmatpush1.msra.mxu0 %v51
    %134 = vmatprep.subr.mxu0 0.0
    %135 = vmatpush1.msra.mxu0 %v50
    %136 = vmatprep.subr.mxu0 0.0
    %137 = vmatpush2.msra.mxu0 0.0
    %138 = vmatprep.subr.mxu0 0.0
    %139 = vmatpush2.msra.mxu0 0.0
    %140 = vmatprep.subr.mxu0 0.0
    %141 = vmatpush2.msra.mxu0 0.0
    %142 = vmatprep.subr.mxu0 0.0
    %143 = vmatpush2.msra.mxu0 0.0
    %144 = vmatprep.subr.mxu0 0.0
    %145 = vmatpush2.msra.mxu0 0.0
    %146 = vmatprep.subr.mxu0 0.0
    %147 = vmatpush2.msra.mxu0 0.0
    %148 = vmatprep.subr.mxu0 0.0
    %149 = vmatpush2.msra.mxu0 0.0
    %150 = vmatprep.subr.mxu0 0.0
    %151 = vmatpush2.msra.mxu0 0.0
    %152 = vmatprep.subr.mxu0 0.0
    %153 = vmatpush2.msra.mxu0 0.0
    %154 = vmatprep.subr.mxu0 0.0
    %155 = vmatpush2.msra.mxu0 0.0
    %156 = vmatprep.subr.mxu0 0.0
    %157 = vmatpush2.msra.mxu0 0.0
    %158 = vmatprep.subr.mxu0 0.0
    %159 = vmatpush2.msra.mxu0 0.0
    %160 = vmatprep.subr.mxu0 0.0
    %161 = vmatpush2.msra.mxu0 0.0
    %162 = vmatprep.subr.mxu0 0.0
    %163 = vmatpush2.msra.mxu0 0.0
    %164 = vmatprep.subr.mxu0 0.0
    %165 = vmatpush2.msra.mxu0 0.0
    %166 = vmatprep.subr.mxu0 0.0
    %167 = vmatpush2.msra.mxu0 0.0
    %168 = vmatprep.mubr.f32.mxu0 0.0
    %169 = vmatmul.mubr.f32.gmra.mxu0 %v57
    %v170 = vpop.f32.mrf.mxu0
    %v171 = vadd.f32 0.0, %v170
    %v172 = vpop.f32.mrf.mxu0
    %173 = vmatprep.mubr.f32.mxu0 0.0
    %174 = vmatmul.mubr.f32.gmra.mxu0 %v60
    %v175 = vpop.f32.mrf.mxu0
    %v176 = vadd.f32 0.0, %v175
    %v177 = vpop.f32.mrf.mxu0
    %178 = vmatprep.mubr.f32.mxu0 0.0
    %179 = vmatmul.mubr.f32.gmra.mxu0 %v63
    %v180 = vpop.f32.mrf.mxu0
    %v181 = vadd.f32 0.0, %v180
    %v182 = vpop.f32.mrf.mxu0
    %183 = vmatprep.mubr.f32.mxu0 0.0
    %184 = vmatmul.mubr.f32.gmra.mxu0 %v66
    %v185 = vpop.f32.mrf.mxu0
    %v186 = vadd.f32 0.0, %v185
    %v187 = vpop.f32.mrf.mxu0
    %188 = vmatprep.mubr.f32.mxu0 0.0
    %189 = vmatmul.mubr.f32.gmra.mxu0 %v69
    %v190 = vpop.f32.mrf.mxu0
    %v191 = vadd.f32 0.0, %v190
    %v192 = vpop.f32.mrf.mxu0
    %193 = vmatprep.mubr.f32.mxu0 0.0
    %194 = vmatmul.mubr.f32.gmra.mxu0 %v72
    %v195 = vpop.f32.mrf.mxu0
    %v196 = vadd.f32 0.0, %v195
    %v197 = vpop.f32.mrf.mxu0
    %198 = vmatprep.mubr.f32.mxu0 0.0
    %199 = vmatmul.mubr.f32.gmra.mxu0 %v75
    %v200 = vpop.f32.mrf.mxu0
    %v201 = vadd.f32 0.0, %v200
    %v202 = vpop.f32.mrf.mxu0
    %203 = vmatprep.mubr.f32.mxu0 0.0
    %204 = vmatmul.mubr.f32.gmra.mxu0 %v78
    %v205 = vpop.f32.mrf.mxu0
    %v206 = vadd.f32 0.0, %v205
    %v207 = vpop.f32.mrf.mxu0
    %208 = vmatprep.mubr.f32.mxu0 0.0
    %209 = vmatmul.mubr.f32.gmra.mxu0 %v81
    %v210 = vpop.f32.mrf.mxu0
    %v211 = vadd.f32 0.0, %v210
    %v212 = vpop.f32.mrf.mxu0
    %213 = vmatprep.mubr.f32.mxu0 0.0
    %214 = vmatmul.mubr.f32.gmra.mxu0 %v84
    %v215 = vpop.f32.mrf.mxu0
    %v216 = vadd.f32 0.0, %v215
    %v217 = vpop.f32.mrf.mxu0
    %218 = vmatprep.mubr.f32.mxu0 0.0
    %219 = vmatmul.mubr.f32.gmra.mxu0 %v87
    %v220 = vpop.f32.mrf.mxu0
    %v221 = vadd.f32 0.0, %v220
    %v222 = vpop.f32.mrf.mxu0
    %223 = vmatprep.mubr.f32.mxu0 0.0
    %224 = vmatmul.mubr.f32.gmra.mxu0 %v90
    %v225 = vpop.f32.mrf.mxu0
    %v226 = vadd.f32 0.0, %v225
    %v227 = vpop.f32.mrf.mxu0
    %228 = vmatprep.mubr.f32.mxu0 0.0
    %229 = vmatmul.mubr.f32.gmra.mxu0 %v93
    %v230 = vpop.f32.mrf.mxu0
    %v231 = vadd.f32 0.0, %v230
    %v232 = vpop.f32.mrf.mxu0
    %233 = vmatprep.mubr.f32.mxu0 0.0
    %234 = vmatmul.mubr.f32.gmra.mxu0 %v96
    %v235 = vpop.f32.mrf.mxu0
    %v236 = vadd.f32 0.0, %v235
    %v237 = vpop.f32.mrf.mxu0
    %238 = vmatprep.mubr.f32.mxu0 0.0
    %239 = vmatmul.mubr.f32.gmra.mxu0 %v99
    %v240 = vpop.f32.mrf.mxu0
    %v241 = vadd.f32 0.0, %v240
    %v242 = vpop.f32.mrf.mxu0
    %243 = vmatprep.mubr.f32.mxu0 0.0
    %244 = vmatmul.mubr.f32.gmra.mxu0 %v102
    %v245 = vpop.f32.mrf.mxu0
    %v246 = vadd.f32 0.0, %v245
    %v247 = vpop.f32.mrf.mxu0
    %248 = vdwg.mxu0
    %v249 = vmul.f32 %v171, 2.0
    %v250 = vmul.f32 %v176, 2.0
    %v251 = vmul.f32 %v181, 2.0
    %v252 = vmul.f32 %v186, 2.0
    %v253 = vmul.f32 %v191, 2.0
    %v254 = vmul.f32 %v196, 2.0
    %v255 = vmul.f32 %v201, 2.0
    %v256 = vmul.f32 %v206, 2.0
    %v257 = vmul.f32 %v211, 2.0
    %v258 = vmul.f32 %v216, 2.0
    %v259 = vmul.f32 %v221, 2.0
    %v260 = vmul.f32 %v226, 2.0
    %v261 = vmul.f32 %v231, 2.0
    %v262 = vmul.f32 %v236, 2.0
    %v263 = vmul.f32 %v241, 2.0
    %v264 = vmul.f32 %v246, 2.0
    %v266 = vlaneseq
    %v267 = vshrl.u32 %v266, 7
    %v268 = vsub.s32 0, %v267
    %v269 = vrot.slane %v54, %v268
    %v271 = vsub.f32 %v249, %v269
    %v272 = vsub.f32 %v250, %v269
    %v273 = vsub.f32 %v251, %v269
    %v274 = vsub.f32 %v252, %v269
    %v275 = vsub.f32 %v253, %v269
    %v276 = vsub.f32 %v254, %v269
    %v277 = vsub.f32 %v255, %v269
    %v278 = vsub.f32 %v256, %v269
    %v279 = vsub.f32 %v257, %v269
    %v280 = vsub.f32 %v258, %v269
    %v281 = vsub.f32 %v259, %v269
    %v282 = vsub.f32 %v260, %v269
    %v283 = vsub.f32 %v261, %v269
    %v284 = vsub.f32 %v262, %v269
    %v285 = vsub.f32 %v263, %v269
    %v286 = vsub.f32 %v264, %v269
    %287 = vmax.xlane.f32.xlu0 %v271
    %v288 = vpop.xlane.xlu0 %287
    %289 = vmax.xlane.f32.xlu0 %v272
    %v290 = vpop.xlane.xlu0 %289
    %291 = vmax.xlane.f32.xlu0 %v273
    %v292 = vpop.xlane.xlu0 %291
    %293 = vmax.xlane.f32.xlu0 %v274
    %v294 = vpop.xlane.xlu0 %293
    %295 = vmax.xlane.f32.xlu0 %v275
    %v296 = vpop.xlane.xlu0 %295
    %297 = vmax.xlane.f32.xlu0 %v276
    %v298 = vpop.xlane.xlu0 %297
    %299 = vmax.xlane.f32.xlu0 %v277
    %v300 = vpop.xlane.xlu0 %299
    %301 = vmax.xlane.f32.xlu0 %v278
    %v302 = vpop.xlane.xlu0 %301
    %303 = vmax.xlane.f32.xlu0 %v279
    %v304 = vpop.xlane.xlu0 %303
    %305 = vmax.xlane.f32.xlu0 %v280
    %v306 = vpop.xlane.xlu0 %305
    %307 = vmax.xlane.f32.xlu0 %v281
    %v308 = vpop.xlane.xlu0 %307
    %309 = vmax.xlane.f32.xlu0 %v282
    %v310 = vpop.xlane.xlu0 %309
    %311 = vmax.xlane.f32.xlu0 %v283
    %v312 = vpop.xlane.xlu0 %311
    %313 = vmax.xlane.f32.xlu0 %v284
    %v314 = vpop.xlane.xlu0 %313
    %315 = vmax.xlane.f32.xlu0 %v285
    %v316 = vpop.xlane.xlu0 %315
    %317 = vmax.xlane.f32.xlu0 %v286
    %v318 = vpop.xlane.xlu0 %317
    %v319 = vsub.f32 %v271, %v288
    %v320 = vsub.f32 %v272, %v290
    %v321 = vsub.f32 %v273, %v292
    %v322 = vsub.f32 %v274, %v294
    %v323 = vsub.f32 %v275, %v296
    %v324 = vsub.f32 %v276, %v298
    %v325 = vsub.f32 %v277, %v300
    %v326 = vsub.f32 %v278, %v302
    %v327 = vsub.f32 %v279, %v304
    %v328 = vsub.f32 %v280, %v306
    %v329 = vsub.f32 %v281, %v308
    %v330 = vsub.f32 %v282, %v310
    %v331 = vsub.f32 %v283, %v312
    %v332 = vsub.f32 %v284, %v314
    %v333 = vsub.f32 %v285, %v316
    %v334 = vsub.f32 %v286, %v318
    %v335 = vmul.f32 %v319, 1.442695
    %v336 = vpow.pop %v335
    %v337 = vmul.f32 %v320, 1.442695
    %v338 = vpow.pop %v337
    %v339 = vmul.f32 %v321, 1.442695
    %v340 = vpow.pop %v339
    %v341 = vmul.f32 %v322, 1.442695
    %v342 = vpow.pop %v341
    %v343 = vmul.f32 %v323, 1.442695
    %v344 = vpow.pop %v343
    %v345 = vmul.f32 %v324, 1.442695
    %v346 = vpow.pop %v345
    %v347 = vmul.f32 %v325, 1.442695
    %v348 = vpow.pop %v347
    %v349 = vmul.f32 %v326, 1.442695
    %v350 = vpow.pop %v349
    %v351 = vmul.f32 %v327, 1.442695
    %v352 = vpow.pop %v351
    %v353 = vmul.f32 %v328, 1.442695
    %v354 = vpow.pop %v353
    %v355 = vmul.f32 %v329, 1.442695
    %v356 = vpow.pop %v355
    %v357 = vmul.f32 %v330, 1.442695
    %v358 = vpow.pop %v357
    %v359 = vmul.f32 %v331, 1.442695
    %v360 = vpow.pop %v359
    %v361 = vmul.f32 %v332, 1.442695
    %v362 = vpow.pop %v361
    %v363 = vmul.f32 %v333, 1.442695
    %v364 = vpow.pop %v363
    %v365 = vmul.f32 %v334, 1.442695
    %v366 = vpow.pop %v365
    %367 = vadd.xlane.f32.xlu0 %v336
    %v368 = vpop.xlane.xlu0 %367
    %369 = vadd.xlane.f32.xlu0 %v338
    %v370 = vpop.xlane.xlu0 %369
    %371 = vadd.xlane.f32.xlu0 %v340
    %v372 = vpop.xlane.xlu0 %371
    %373 = vadd.xlane.f32.xlu0 %v342
    %v374 = vpop.xlane.xlu0 %373
    %375 = vadd.xlane.f32.xlu0 %v344
    %v376 = vpop.xlane.xlu0 %375
    %377 = vadd.xlane.f32.xlu0 %v346
    %v378 = vpop.xlane.xlu0 %377
    %379 = vadd.xlane.f32.xlu0 %v348
    %v380 = vpop.xlane.xlu0 %379
    %381 = vadd.xlane.f32.xlu0 %v350
    %v382 = vpop.xlane.xlu0 %381
    %383 = vadd.xlane.f32.xlu0 %v352
    %v384 = vpop.xlane.xlu0 %383
    %385 = vadd.xlane.f32.xlu0 %v354
    %v386 = vpop.xlane.xlu0 %385
    %387 = vadd.xlane.f32.xlu0 %v356
    %v388 = vpop.xlane.xlu0 %387
    %389 = vadd.xlane.f32.xlu0 %v358
    %v390 = vpop.xlane.xlu0 %389
    %391 = vadd.xlane.f32.xlu0 %v360
    %v392 = vpop.xlane.xlu0 %391
    %393 = vadd.xlane.f32.xlu0 %v362
    %v394 = vpop.xlane.xlu0 %393
    %395 = vadd.xlane.f32.xlu0 %v364
    %v396 = vpop.xlane.xlu0 %395
    %397 = vadd.xlane.f32.xlu0 %v366
    %v398 = vpop.xlane.xlu0 %397
    %v399 = vrcp.pop %v368
    %v400 = vrcp.pop %v370
    %v401 = vrcp.pop %v372
    %v402 = vrcp.pop %v374
    %v403 = vrcp.pop %v376
    %v404 = vrcp.pop %v378
    %v405 = vrcp.pop %v380
    %v406 = vrcp.pop %v382
    %v407 = vrcp.pop %v384
    %v408 = vrcp.pop %v386
    %v409 = vrcp.pop %v388
    %v410 = vrcp.pop %v390
    %v411 = vrcp.pop %v392
    %v412 = vrcp.pop %v394
    %v413 = vrcp.pop %v396
    %v414 = vrcp.pop %v398
    %v415 = vmul.f32 %v368, %v399
    %v416 = vmul.f32 %v370, %v400
    %v417 = vmul.f32 %v372, %v401
    %v418 = vmul.f32 %v374, %v402
    %v419 = vmul.f32 %v376, %v403
    %v420 = vmul.f32 %v378, %v404
    %v421 = vmul.f32 %v380, %v405
    %v422 = vmul.f32 %v382, %v406
    %v423 = vmul.f32 %v384, %v407
    %v424 = vmul.f32 %v386, %v408
    %v425 = vmul.f32 %v388, %v409
    %v426 = vmul.f32 %v390, %v410
    %v427 = vmul.f32 %v392, %v411
    %v428 = vmul.f32 %v394, %v412
    %v429 = vmul.f32 %v396, %v413
    %v430 = vmul.f32 %v398, %v414
    %v431 = vsub.f32 2.0, %v415
    %v432 = vsub.f32 2.0, %v416
    %v433 = vsub.f32 2.0, %v417
    %v434 = vsub.f32 2.0, %v418
    %v435 = vsub.f32 2.0, %v419
    %v436 = vsub.f32 2.0, %v420
    %v437 = vsub.f32 2.0, %v421
    %v438 = vsub.f32 2.0, %v422
    %v439 = vsub.f32 2.0, %v423
    %v440 = vsub.f32 2.0, %v424
    %v441 = vsub.f32 2.0, %v425
    %v442 = vsub.f32 2.0, %v426
    %v443 = vsub.f32 2.0, %v427
    %v444 = vsub.f32 2.0, %v428
    %v445 = vsub.f32 2.0, %v429
    %v446 = vsub.f32 2.0, %v430
    %v447 = vmul.f32 %v399, %v431
    %v448 = vmul.f32 %v400, %v432
    %v449 = vmul.f32 %v401, %v433
    %v450 = vmul.f32 %v402, %v434
    %v451 = vmul.f32 %v403, %v435
    %v452 = vmul.f32 %v404, %v436
    %v453 = vmul.f32 %v405, %v437
    %v454 = vmul.f32 %v406, %v438
    %v455 = vmul.f32 %v407, %v439
    %v456 = vmul.f32 %v408, %v440
    %v457 = vmul.f32 %v409, %v441
    %v458 = vmul.f32 %v410, %v442
    %v459 = vmul.f32 %v411, %v443
    %v460 = vmul.f32 %v412, %v444
    %v461 = vmul.f32 %v413, %v445
    %v462 = vmul.f32 %v414, %v446
    %v463 = vmul.f32 %v336, %v447
    %v464 = vmul.f32 %v338, %v448
    %v465 = vmul.f32 %v340, %v449
    %v466 = vmul.f32 %v342, %v450
    %v467 = vmul.f32 %v344, %v451
    %v468 = vmul.f32 %v346, %v452
    %v469 = vmul.f32 %v348, %v453
    %v470 = vmul.f32 %v350, %v454
    %v471 = vmul.f32 %v352, %v455
    %v472 = vmul.f32 %v354, %v456
    %v473 = vmul.f32 %v356, %v457
    %v474 = vmul.f32 %v358, %v458
    %v475 = vmul.f32 %v360, %v459
    %v476 = vmul.f32 %v362, %v460
    %v477 = vmul.f32 %v364, %v461
    %v478 = vmul.f32 %v366, %v462
    %479 = vst [vmem:[#allocation6] sm:$0xff] %v463
    %480 = vst [vmem:[#allocation6 + $0x8] sm:$0xff] %v464
    %481 = vst [vmem:[#allocation6 + $0x10] sm:$0xff] %v465
    %482 = vst [vmem:[#allocation6 + $0x18] sm:$0xff] %v466
    %483 = vst [vmem:[#allocation6 + $0x20] sm:$0xff] %v467
    %484 = vst [vmem:[#allocation6 + $0x28] sm:$0xff] %v468
    %485 = vst [vmem:[#allocation6 + $0x30] sm:$0xff] %v469
    %486 = vst [vmem:[#allocation6 + $0x38] sm:$0xff] %v470
    %487 = vst [vmem:[#allocation6 + $0x40] sm:$0xff] %v471
    %488 = vst [vmem:[#allocation6 + $0x48] sm:$0xff] %v472
    %489 = vst [vmem:[#allocation6 + $0x50] sm:$0xff] %v473
    %490 = vst [vmem:[#allocation6 + $0x58] sm:$0xff] %v474
    %491 = vst [vmem:[#allocation6 + $0x60] sm:$0xff] %v475
    %492 = vst [vmem:[#allocation6 + $0x68] sm:$0xff] %v476
    %493 = vst [vmem:[#allocation6 + $0x70] sm:$0xff] %v477
    %494 = vst [vmem:[#allocation6 + $0x78] sm:$0xff] %v478
    %v495 = vlaneseq
    %v496 = vand.u32 %v495, 127
    %v497 = vcvt.s32.f32 %v496
    %vm498 = vcmp.eq.f32.partialorder %v271, %v288
    %vm499 = vcmp.eq.f32.partialorder %v272, %v290
    %vm500 = vcmp.eq.f32.partialorder %v273, %v292
    %vm501 = vcmp.eq.f32.partialorder %v274, %v294
    %vm502 = vcmp.eq.f32.partialorder %v275, %v296
    %vm503 = vcmp.eq.f32.partialorder %v276, %v298
    %vm504 = vcmp.eq.f32.partialorder %v277, %v300
    %vm505 = vcmp.eq.f32.partialorder %v278, %v302
    %vm506 = vcmp.eq.f32.partialorder %v279, %v304
    %vm507 = vcmp.eq.f32.partialorder %v280, %v306
    %vm508 = vcmp.eq.f32.partialorder %v281, %v308
    %vm509 = vcmp.eq.f32.partialorder %v282, %v310
    %vm510 = vcmp.eq.f32.partialorder %v283, %v312
    %vm511 = vcmp.eq.f32.partialorder %v284, %v314
    %vm512 = vcmp.eq.f32.partialorder %v285, %v316
    %vm513 = vcmp.eq.f32.partialorder %v286, %v318
    %v514 = vsel %vm498, %v497, 128.0
    %v515 = vsel %vm499, %v497, 128.0
    %v516 = vsel %vm500, %v497, 128.0
    %v517 = vsel %vm501, %v497, 128.0
    %v518 = vsel %vm502, %v497, 128.0
    %v519 = vsel %vm503, %v497, 128.0
    %v520 = vsel %vm504, %v497, 128.0
    %v521 = vsel %vm505, %v497, 128.0
    %v522 = vsel %vm506, %v497, 128.0
    %v523 = vsel %vm507, %v497, 128.0
    %v524 = vsel %vm508, %v497, 128.0
    %v525 = vsel %vm509, %v497, 128.0
    %v526 = vsel %vm510, %v497, 128.0
    %v527 = vsel %vm511, %v497, 128.0
    %v528 = vsel %vm512, %v497, 128.0
    %v529 = vsel %vm513, %v497, 128.0
    %530 = vmin.xlane.f32.xlu0 %v514
    %v531 = vpop.xlane.xlu0 %530
    %532 = vmin.xlane.f32.xlu0 %v515
    %v533 = vpop.xlane.xlu0 %532
    %534 = vmin.xlane.f32.xlu0 %v516
    %v535 = vpop.xlane.xlu0 %534
    %536 = vmin.xlane.f32.xlu0 %v517
    %v537 = vpop.xlane.xlu0 %536
    %538 = vmin.xlane.f32.xlu0 %v518
    %v539 = vpop.xlane.xlu0 %538
    %540 = vmin.xlane.f32.xlu0 %v519
    %v541 = vpop.xlane.xlu0 %540
    %542 = vmin.xlane.f32.xlu0 %v520
    %v543 = vpop.xlane.xlu0 %542
    %544 = vmin.xlane.f32.xlu0 %v521
    %v545 = vpop.xlane.xlu0 %544
    %546 = vmin.xlane.f32.xlu0 %v522
    %v547 = vpop.xlane.xlu0 %546
    %548 = vmin.xlane.f32.xlu0 %v523
    %v549 = vpop.xlane.xlu0 %548
    %550 = vmin.xlane.f32.xlu0 %v524
    %v551 = vpop.xlane.xlu0 %550
    %552 = vmin.xlane.f32.xlu0 %v525
    %v553 = vpop.xlane.xlu0 %552
    %554 = vmin.xlane.f32.xlu0 %v526
    %v555 = vpop.xlane.xlu0 %554
    %556 = vmin.xlane.f32.xlu0 %v527
    %v557 = vpop.xlane.xlu0 %556
    %558 = vmin.xlane.f32.xlu0 %v528
    %v559 = vpop.xlane.xlu0 %558
    %560 = vmin.xlane.f32.xlu0 %v529
    %v561 = vpop.xlane.xlu0 %560
    %vm562 = vcmp.eq.f32.partialorder %v497, %v531
    %vm563 = vcmp.eq.f32.partialorder %v497, %v533
    %vm564 = vcmp.eq.f32.partialorder %v497, %v535
    %vm565 = vcmp.eq.f32.partialorder %v497, %v537
    %vm566 = vcmp.eq.f32.partialorder %v497, %v539
    %vm567 = vcmp.eq.f32.partialorder %v497, %v541
    %vm568 = vcmp.eq.f32.partialorder %v497, %v543
    %vm569 = vcmp.eq.f32.partialorder %v497, %v545
    %vm570 = vcmp.eq.f32.partialorder %v497, %v547
    %vm571 = vcmp.eq.f32.partialorder %v497, %v549
    %vm572 = vcmp.eq.f32.partialorder %v497, %v551
    %vm573 = vcmp.eq.f32.partialorder %v497, %v553
    %vm574 = vcmp.eq.f32.partialorder %v497, %v555
    %vm575 = vcmp.eq.f32.partialorder %v497, %v557
    %vm576 = vcmp.eq.f32.partialorder %v497, %v559
    %vm577 = vcmp.eq.f32.partialorder %v497, %v561
    %v578 = vsel %vm562, 1, 0
    %v579 = vsel %vm563, 1, 0
    %v580 = vsel %vm564, 1, 0
    %v581 = vsel %vm565, 1, 0
    %v582 = vsel %vm566, 1, 0
    %v583 = vsel %vm567, 1, 0
    %v584 = vsel %vm568, 1, 0
    %v585 = vsel %vm569, 1, 0
    %v586 = vsel %vm570, 1, 0
    %v587 = vsel %vm571, 1, 0
    %v588 = vsel %vm572, 1, 0
    %v589 = vsel %vm573, 1, 0
    %v590 = vsel %vm574, 1, 0
    %v591 = vsel %vm575, 1, 0
    %v592 = vsel %vm576, 1, 0
    %v593 = vsel %vm577, 1, 0
    %v594 = vcvt.s32.f32 %v578
    %v595 = vcvt.s32.f32 %v579
    %v596 = vcvt.s32.f32 %v580
    %v597 = vcvt.s32.f32 %v581
    %v598 = vcvt.s32.f32 %v582
    %v599 = vcvt.s32.f32 %v583
    %v600 = vcvt.s32.f32 %v584
    %v601 = vcvt.s32.f32 %v585
    %v602 = vcvt.s32.f32 %v586
    %v603 = vcvt.s32.f32 %v587
    %v604 = vcvt.s32.f32 %v588
    %v605 = vcvt.s32.f32 %v589
    %v606 = vcvt.s32.f32 %v590
    %v607 = vcvt.s32.f32 %v591
    %v608 = vcvt.s32.f32 %v592
    %v609 = vcvt.s32.f32 %v593
    %610 = vmatprep.subr.mxu0 0.0
    %611 = vmatpush1.xpose.msra.mxu0 0.0
    %612 = vmatprep.subr.mxu0 0.0
    %613 = vmatpush1.xpose.msra.mxu0 0.0
    %614 = vmatprep.subr.mxu0 0.0
    %615 = vmatpush1.xpose.msra.mxu0 0.0
    %616 = vmatprep.subr.mxu0 0.0
    %617 = vmatpush1.xpose.msra.mxu0 0.0
    %618 = vmatprep.subr.mxu0 0.0
    %619 = vmatpush1.xpose.msra.mxu0 0.0
    %620 = vmatprep.subr.mxu0 0.0
    %621 = vmatpush1.xpose.msra.mxu0 0.0
    %622 = vmatprep.subr.mxu0 0.0
    %623 = vmatpush1.xpose.msra.mxu0 0.0
    %624 = vmatprep.subr.mxu0 0.0
    %625 = vmatpush1.xpose.msra.mxu0 0.0
    %626 = vmatprep.subr.mxu0 0.0
    %627 = vmatpush1.xpose.msra.mxu0 0.0
    %628 = vmatprep.subr.mxu0 0.0
    %629 = vmatpush1.xpose.msra.mxu0 0.0
    %630 = vmatprep.subr.mxu0 0.0
    %631 = vmatpush1.xpose.msra.mxu0 0.0
    %632 = vmatprep.subr.mxu0 0.0
    %633 = vmatpush1.xpose.msra.mxu0 0.0
    %634 = vmatprep.subr.mxu0 0.0
    %635 = vmatpush1.xpose.msra.mxu0 %v53
    %636 = vmatprep.subr.mxu0 0.0
    %637 = vmatpush1.xpose.msra.mxu0 %v52
    %638 = vmatprep.subr.mxu0 0.0
    %639 = vmatpush1.xpose.msra.mxu0 %v51
    %640 = vmatprep.subr.mxu0 0.0
    %641 = vmatpush1.xpose.msra.mxu0 %v50
    %642 = vmatprep.subr.mxu0 0.0
    %643 = vmatpush2.xpose.msra.mxu0 0.0
    %644 = vmatprep.subr.mxu0 0.0
    %645 = vmatpush2.xpose.msra.mxu0 0.0
    %646 = vmatprep.subr.mxu0 0.0
    %647 = vmatpush2.xpose.msra.mxu0 0.0
    %648 = vmatprep.subr.mxu0 0.0
    %649 = vmatpush2.xpose.msra.mxu0 0.0
    %650 = vmatprep.subr.mxu0 0.0
    %651 = vmatpush2.xpose.msra.mxu0 0.0
    %652 = vmatprep.subr.mxu0 0.0
    %653 = vmatpush2.xpose.msra.mxu0 0.0
    %654 = vmatprep.subr.mxu0 0.0
    %655 = vmatpush2.xpose.msra.mxu0 0.0
    %656 = vmatprep.subr.mxu0 0.0
    %657 = vmatpush2.xpose.msra.mxu0 0.0
    %658 = vmatprep.subr.mxu0 0.0
    %659 = vmatpush2.xpose.msra.mxu0 0.0
    %660 = vmatprep.subr.mxu0 0.0
    %661 = vmatpush2.xpose.msra.mxu0 0.0
    %662 = vmatprep.subr.mxu0 0.0
    %663 = vmatpush2.xpose.msra.mxu0 0.0
    %664 = vmatprep.subr.mxu0 0.0
    %665 = vmatpush2.xpose.msra.mxu0 0.0
    %666 = vmatprep.subr.mxu0 0.0
    %667 = vmatpush2.xpose.msra.mxu0 0.0
    %668 = vmatprep.subr.mxu0 0.0
    %669 = vmatpush2.xpose.msra.mxu0 0.0
    %670 = vmatprep.subr.mxu0 0.0
    %671 = vmatpush2.xpose.msra.mxu0 0.0
    %672 = vmatprep.subr.mxu0 0.0
    %673 = vmatpush2.xpose.msra.mxu0 0.0
    %674 = vmatprep.mubr.f32.mxu0 0.0
    %675 = vmatmul.mubr.f32.gmra.mxu0 %v594
    %v676 = vpop.f32.mrf.mxu0
    %v677 = vadd.f32 0.0, %v676
    %v678 = vpop.f32.mrf.mxu0
    %679 = vmatprep.mubr.f32.mxu0 0.0
    %680 = vmatmul.mubr.f32.gmra.mxu0 %v595
    %v681 = vpop.f32.mrf.mxu0
    %v682 = vadd.f32 0.0, %v681
    %v683 = vpop.f32.mrf.mxu0
    %684 = vmatprep.mubr.f32.mxu0 0.0
    %685 = vmatmul.mubr.f32.gmra.mxu0 %v596
    %v686 = vpop.f32.mrf.mxu0
    %v687 = vadd.f32 0.0, %v686
    %v688 = vpop.f32.mrf.mxu0
    %689 = vmatprep.mubr.f32.mxu0 0.0
    %690 = vmatmul.mubr.f32.gmra.mxu0 %v597
    %v691 = vpop.f32.mrf.mxu0
    %v692 = vadd.f32 0.0, %v691
    %v693 = vpop.f32.mrf.mxu0
    %694 = vmatprep.mubr.f32.mxu0 0.0
    %695 = vmatmul.mubr.f32.gmra.mxu0 %v598
    %v696 = vpop.f32.mrf.mxu0
    %v697 = vadd.f32 0.0, %v696
    %v698 = vpop.f32.mrf.mxu0
    %699 = vmatprep.mubr.f32.mxu0 0.0
    %700 = vmatmul.mubr.f32.gmra.mxu0 %v599
    %v701 = vpop.f32.mrf.mxu0
    %v702 = vadd.f32 0.0, %v701
    %v703 = vpop.f32.mrf.mxu0
    %704 = vmatprep.mubr.f32.mxu0 0.0
    %705 = vmatmul.mubr.f32.gmra.mxu0 %v600
    %v706 = vpop.f32.mrf.mxu0
    %v707 = vadd.f32 0.0, %v706
    %v708 = vpop.f32.mrf.mxu0
    %709 = vmatprep.mubr.f32.mxu0 0.0
    %710 = vmatmul.mubr.f32.gmra.mxu0 %v601
    %v711 = vpop.f32.mrf.mxu0
    %v712 = vadd.f32 0.0, %v711
    %v713 = vpop.f32.mrf.mxu0
    %714 = vmatprep.mubr.f32.mxu0 0.0
    %715 = vmatmul.mubr.f32.gmra.mxu0 %v602
    %v716 = vpop.f32.mrf.mxu0
    %v717 = vadd.f32 0.0, %v716
    %v718 = vpop.f32.mrf.mxu0
    %719 = vmatprep.mubr.f32.mxu0 0.0
    %720 = vmatmul.mubr.f32.gmra.mxu0 %v603
    %v721 = vpop.f32.mrf.mxu0
    %v722 = vadd.f32 0.0, %v721
    %v723 = vpop.f32.mrf.mxu0
    %724 = vmatprep.mubr.f32.mxu0 0.0
    %725 = vmatmul.mubr.f32.gmra.mxu0 %v604
    %v726 = vpop.f32.mrf.mxu0
    %v727 = vadd.f32 0.0, %v726
    %v728 = vpop.f32.mrf.mxu0
    %729 = vmatprep.mubr.f32.mxu0 0.0
    %730 = vmatmul.mubr.f32.gmra.mxu0 %v605
    %v731 = vpop.f32.mrf.mxu0
    %v732 = vadd.f32 0.0, %v731
    %v733 = vpop.f32.mrf.mxu0
    %734 = vmatprep.mubr.f32.mxu0 0.0
    %735 = vmatmul.mubr.f32.gmra.mxu0 %v606
    %v736 = vpop.f32.mrf.mxu0
    %v737 = vadd.f32 0.0, %v736
    %v738 = vpop.f32.mrf.mxu0
    %739 = vmatprep.mubr.f32.mxu0 0.0
    %740 = vmatmul.mubr.f32.gmra.mxu0 %v607
    %v741 = vpop.f32.mrf.mxu0
    %v742 = vadd.f32 0.0, %v741
    %v743 = vpop.f32.mrf.mxu0
    %744 = vmatprep.mubr.f32.mxu0 0.0
    %745 = vmatmul.mubr.f32.gmra.mxu0 %v608
    %v746 = vpop.f32.mrf.mxu0
    %v747 = vadd.f32 0.0, %v746
    %v748 = vpop.f32.mrf.mxu0
    %749 = vmatprep.mubr.f32.mxu0 0.0
    %750 = vmatmul.mubr.f32.gmra.mxu0 %v609
    %v751 = vpop.f32.mrf.mxu0
    %v752 = vadd.f32 0.0, %v751
    %v753 = vpop.f32.mrf.mxu0
    %754 = vdwg.mxu0
    %755 = vst.msk [vmem:[#allocation5] sm:$0xff] %vm55, %v677
    %756 = vst.msk [vmem:[#allocation5 + $0x8] sm:$0xff] %vm55, %v682
    %757 = vst.msk [vmem:[#allocation5 + $0x10] sm:$0xff] %vm55, %v687
    %758 = vst.msk [vmem:[#allocation5 + $0x18] sm:$0xff] %vm55, %v692
    %759 = vst.msk [vmem:[#allocation5 + $0x20] sm:$0xff] %vm55, %v697
    %760 = vst.msk [vmem:[#allocation5 + $0x28] sm:$0xff] %vm55, %v702
    %761 = vst.msk [vmem:[#allocation5 + $0x30] sm:$0xff] %vm55, %v707
    %762 = vst.msk [vmem:[#allocation5 + $0x38] sm:$0xff] %vm55, %v712
    %763 = vst.msk [vmem:[#allocation5 + $0x40] sm:$0xff] %vm55, %v717
    %764 = vst.msk [vmem:[#allocation5 + $0x48] sm:$0xff] %vm55, %v722
    %765 = vst.msk [vmem:[#allocation5 + $0x50] sm:$0xff] %vm55, %v727
    %766 = vst.msk [vmem:[#allocation5 + $0x58] sm:$0xff] %vm55, %v732
    %767 = vst.msk [vmem:[#allocation5 + $0x60] sm:$0xff] %vm55, %v737
    %768 = vst.msk [vmem:[#allocation5 + $0x68] sm:$0xff] %vm55, %v742
    %769 = vst.msk [vmem:[#allocation5 + $0x70] sm:$0xff] %vm55, %v747
    %770 = vst.msk [vmem:[#allocation5 + $0x78] sm:$0xff] %vm55, %v752
    %771 = vmatprep.subr.mxu0 0.0
    %772 = vmatpush1.xpose.msra.mxu0 %v609
    %773 = vmatprep.subr.mxu0 0.0
    %774 = vmatpush1.xpose.msra.mxu0 %v608
    %775 = vmatprep.subr.mxu0 0.0
    %776 = vmatpush1.xpose.msra.mxu0 %v607
    %777 = vmatprep.subr.mxu0 0.0
    %778 = vmatpush1.xpose.msra.mxu0 %v606
    %779 = vmatprep.subr.mxu0 0.0
    %780 = vmatpush1.xpose.msra.mxu0 %v605
    %781 = vmatprep.subr.mxu0 0.0
    %782 = vmatpush1.xpose.msra.mxu0 %v604
    %783 = vmatprep.subr.mxu0 0.0
    %784 = vmatpush1.xpose.msra.mxu0 %v603
    %785 = vmatprep.subr.mxu0 0.0
    %786 = vmatpush1.xpose.msra.mxu0 %v602
    %787 = vmatprep.subr.mxu0 0.0
    %788 = vmatpush1.xpose.msra.mxu0 %v601
    %789 = vmatprep.subr.mxu0 0.0
    %790 = vmatpush1.xpose.msra.mxu0 %v600
    %791 = vmatprep.subr.mxu0 0.0
    %792 = vmatpush1.xpose.msra.mxu0 %v599
    %793 = vmatprep.subr.mxu0 0.0
    %794 = vmatpush1.xpose.msra.mxu0 %v598
    %795 = vmatprep.subr.mxu0 0.0
    %796 = vmatpush1.xpose.msra.mxu0 %v597
    %797 = vmatprep.subr.mxu0 0.0
    %798 = vmatpush1.xpose.msra.mxu0 %v596
    %799 = vmatprep.subr.mxu0 0.0
    %800 = vmatpush1.xpose.msra.mxu0 %v595
    %801 = vmatprep.subr.mxu0 0.0
    %802 = vmatpush1.xpose.msra.mxu0 %v594
    %803 = vmatprep.subr.mxu0 0.0
    %804 = vmatpush2.xpose.msra.mxu0 0.0
    %805 = vmatprep.subr.mxu0 0.0
    %806 = vmatpush2.xpose.msra.mxu0 0.0
    %807 = vmatprep.subr.mxu0 0.0
    %808 = vmatpush2.xpose.msra.mxu0 0.0
    %809 = vmatprep.subr.mxu0 0.0
    %810 = vmatpush2.xpose.msra.mxu0 0.0
    %811 = vmatprep.subr.mxu0 0.0
    %812 = vmatpush2.xpose.msra.mxu0 0.0
    %813 = vmatprep.subr.mxu0 0.0
    %814 = vmatpush2.xpose.msra.mxu0 0.0
    %815 = vmatprep.subr.mxu0 0.0
    %816 = vmatpush2.xpose.msra.mxu0 0.0
    %817 = vmatprep.subr.mxu0 0.0
    %818 = vmatpush2.xpose.msra.mxu0 0.0
    %819 = vmatprep.subr.mxu0 0.0
    %820 = vmatpush2.xpose.msra.mxu0 0.0
    %821 = vmatprep.subr.mxu0 0.0
    %822 = vmatpush2.xpose.msra.mxu0 0.0
    %823 = vmatprep.subr.mxu0 0.0
    %824 = vmatpush2.xpose.msra.mxu0 0.0
    %825 = vmatprep.subr.mxu0 0.0
    %826 = vmatpush2.xpose.msra.mxu0 0.0
    %827 = vmatprep.subr.mxu0 0.0
    %828 = vmatpush2.xpose.msra.mxu0 0.0
    %829 = vmatprep.subr.mxu0 0.0
    %830 = vmatpush2.xpose.msra.mxu0 0.0
    %831 = vmatprep.subr.mxu0 0.0
    %832 = vmatpush2.xpose.msra.mxu0 0.0
    %833 = vmatprep.subr.mxu0 0.0
    %834 = vmatpush2.xpose.msra.mxu0 0.0
    %835 = vmatprep.mubr.f32.mxu0 0.0
    %836 = vmatmul.mubr.f32.gmra.mxu0 %v497
    %v837 = vpop.f32.mrf.mxu0
    %v838 = vadd.f32 0.0, %v837
    %v839 = vpop.f32.mrf.mxu0
    %840 = vdwg.mxu0
    %v841 = vcvt.f32.s32.to.zero.pseudo %v838
    %842 = vst [vmem:[%s5] sm:$0x1] %v841
    %v843 = vsub.f32 %v677, %v34
    %v844 = vsub.f32 %v682, %v35
    %v845 = vsub.f32 %v687, %v36
    %v846 = vsub.f32 %v692, %v37
    %v847 = vsub.f32 %v697, %v38
    %v848 = vsub.f32 %v702, %v39
    %v849 = vsub.f32 %v707, %v40
    %v850 = vsub.f32 %v712, %v41
    %v851 = vsub.f32 %v717, %v42
    %v852 = vsub.f32 %v722, %v43
    %v853 = vsub.f32 %v727, %v44
    %v854 = vsub.f32 %v732, %v45
    %v855 = vsub.f32 %v737, %v46
    %v856 = vsub.f32 %v742, %v47
    %v857 = vsub.f32 %v747, %v48
    %v858 = vsub.f32 %v752, %v49
    %v859 = vmul.f32 %v843, %v843
    %v860 = vmul.f32 %v844, %v844
    %v861 = vmul.f32 %v845, %v845
    %v862 = vmul.f32 %v846, %v846
    %v863 = vmul.f32 %v847, %v847
    %v864 = vmul.f32 %v848, %v848
    %v865 = vmul.f32 %v849, %v849
    %v866 = vmul.f32 %v850, %v850
    %v867 = vmul.f32 %v851, %v851
    %v868 = vmul.f32 %v852, %v852
    %v869 = vmul.f32 %v853, %v853
    %v870 = vmul.f32 %v854, %v854
    %v871 = vmul.f32 %v855, %v855
    %v872 = vmul.f32 %v856, %v856
    %v873 = vmul.f32 %v857, %v857
    %v874 = vmul.f32 %v858, %v858
    %v875 = vsel %vm55, %v859, 0.0
    %v876 = vsel %vm55, %v860, 0.0
    %v877 = vadd.f32 %v875, %v876
    %v878 = vsel %vm55, %v861, 0.0
    %v879 = vadd.f32 %v877, %v878
    %v880 = vsel %vm55, %v862, 0.0
    %v881 = vadd.f32 %v879, %v880
    %v882 = vsel %vm55, %v863, 0.0
    %v883 = vadd.f32 %v881, %v882
    %v884 = vsel %vm55, %v864, 0.0
    %v885 = vadd.f32 %v883, %v884
    %v886 = vsel %vm55, %v865, 0.0
    %v887 = vadd.f32 %v885, %v886
    %v888 = vsel %vm55, %v866, 0.0
    %v889 = vadd.f32 %v887, %v888
    %v890 = vsel %vm55, %v867, 0.0
    %v891 = vadd.f32 %v889, %v890
    %v892 = vsel %vm55, %v868, 0.0
    %v893 = vadd.f32 %v891, %v892
    %v894 = vsel %vm55, %v869, 0.0
    %v895 = vadd.f32 %v893, %v894
    %v896 = vsel %vm55, %v870, 0.0
    %v897 = vadd.f32 %v895, %v896
    %v898 = vsel %vm55, %v871, 0.0
    %v899 = vadd.f32 %v897, %v898
    %v900 = vsel %vm55, %v872, 0.0
    %v901 = vadd.f32 %v899, %v900
    %v902 = vsel %vm55, %v873, 0.0
    %v903 = vadd.f32 %v901, %v902
    %v904 = vsel %vm55, %v874, 0.0
    %v905 = vadd.f32 %v903, %v904
    %v906 = vrot.slane %v905, 4
    %v907 = vadd.f32 %v905, %v906
    %v908 = vrot.slane %v907, 2
    %v909 = vadd.f32 %v907, %v908
    %v910 = vrot.slane %v909, 1
    %v911 = vadd.f32 %v909, %v910
    %vm912 = vcmask 253952
    %913 = vst.msk [vmem:[%s6] sm:$0x1] %vm912, %v911
    // Predicated region
    $region18: #{codebook_forward.1} parent=1 // pred_check
      _
    $region19: #{codebook_forward.1} parent=1 // pred_check_branch
      %915 = sbr.rel (0) target = $region21
    $region20: #{codebook_forward.1} parent=1 // pred_region
      %s917 = ssub.s32 2048, 2048
      %918 = vsyncadd [#allocation4], %s917
      %s919 = sshll.u32 [#allocation5], 4
      %s920 = int_to_ptr.vmem [resolvable:$true] %s919
      %925 = dma.vmem_to_hbm [thread:$0]  %s920, 2048, %s3, [#allocation4], 128, 128, 8
    $region21: #{codebook_forward.1} parent=1 // pred_fallthru
      _
    // Predicated region
    $region22: #{codebook_forward.1} parent=1 // pred_check
      _
    $region23: #{codebook_forward.1} parent=1 // pred_check_branch
      %927 = sbr.rel (0) target = $region25
    $region24: #{codebook_forward.1} parent=1 // pred_region
      %s929 = ssub.s32 2048, 2048
      %930 = vsyncadd [#allocation7], %s929
      %s931 = sshll.u32 [#allocation6], 4
      %s932 = int_to_ptr.vmem [resolvable:$true] %s931
      %937 = dma.vmem_to_hbm [thread:$0]  %s932, 2048, %s4, [#allocation7], 128, 128, 8
    $region25: #{codebook_forward.1} parent=1 // pred_fallthru
      _
    // Predicated region
    $region26: #{codebook_forward.1} parent=1 // pred_check
      _
    $region27: #{codebook_forward.1} parent=1 // pred_check_branch
      %939 = sbr.rel (0) target = $region29
    $region28: #{codebook_forward.1} parent=1 // pred_region
      _
    $region29: #{codebook_forward.1} parent=1 // pred_fallthru
      _
    // Predicated region
    $region30: #{codebook_forward.1} parent=1 // pred_check
      _
    $region31: #{codebook_forward.1} parent=1 // pred_check_branch
      %941 = sbr.rel (0) target = $region33
    $region32: #{codebook_forward.1} parent=1 // pred_region
      _
    $region33: #{codebook_forward.1} parent=1 // pred_fallthru
      _
    // Predicated region
    $region34: #{codebook_forward.1} parent=1 // pred_check
      _
    $region35: #{codebook_forward.1} parent=1 // pred_check_branch
      %943 = sbr.rel (0) target = $region37
    $region36: #{codebook_forward.1} parent=1 // pred_region
      %944 = dma.done [#allocation4], 2048
    $region37: #{codebook_forward.1} parent=1 // pred_fallthru
      _
    // Predicated region
    $region38: #{codebook_forward.1} parent=1 // pred_check
      _
    $region39: #{codebook_forward.1} parent=1 // pred_check_branch
      %946 = sbr.rel (0) target = $region41
    $region40: #{codebook_forward.1} parent=1 // pred_region
      %947 = dma.done [#allocation7], 2048
    $region41: #{codebook_forward.1} parent=1 // pred_fallthru
      _
    // Predicated region
    $region42: #{codebook_forward.1} parent=1 // pred_check
      _
    $region43: #{codebook_forward.1} parent=1 // pred_check_branch
      %949 = sbr.rel (0) target = $region45
    $region44: #{codebook_forward.1} parent=1 // pred_region
      _
    $region45: #{codebook_forward.1} parent=1 // pred_fallthru
      _
    // Predicated region
    $region46: #{codebook_forward.1} parent=1 // pred_check
      _
    $region47: #{codebook_forward.1} parent=1 // pred_check_branch
      %951 = sbr.rel (0) target = $region49
    $region48: #{codebook_forward.1} parent=1 // pred_region
      _
    $region49: #{codebook_forward.1} parent=1 // pred_fallthru
      _
    %952 = vsyncpa [#allocation3], 1
    %953 = vsyncpa [#allocation4], 1
    %954 = vsyncpa [#allocation7], 1

</llo_original>
